<compile_context>
chip_gen: v7x
topology: tpu7x:2x2x1
jax: 0.10.0
libtpu: 0.0.40
codegen_flags: <defaults>
</compile_context>

<pallas_src>
import jax
import jax.numpy as jnp
from jax.experimental import pallas as pl
from jax.experimental.pallas import tpu as pltpu


# ----------------------------- Pallas kernel --------------------------------

def _proj_kernel(x_ref, w_ref, b_ref, o_ref):
    # x: (tm, K) native dtype (fp32 ok), w: (K, tn) bf16, b: (1, tn) fp32,
    # o: (tm, tn) out dtype. K is untiled, so each (i, j) grid step is a
    # single-shot dot + bias: no accumulator scratch, no K-axis revisits.
    x = x_ref[...].astype(w_ref.dtype)  # in-kernel cast; hides under the MXU
    acc = jnp.dot(x, w_ref[...], preferred_element_type=jnp.float32)
    o_ref[...] = (acc + b_ref[...]).astype(o_ref.dtype)


# ------------------------------ Wrappers -------------------------------------

def _pick_tile(dim, preferred, align):
    """Largest tile <= `preferred` that is a multiple of `align` and divides
    `dim`; falls back to the full dim (always a legal block shape)."""
    if dim <= preferred:
        return dim
    t = (preferred // align) * align
    while t >= align:
        if dim % t == 0:
            return t
        t -= align
    return dim


def _has_multiple_tensorcores():
    """True on chips with >1 TensorCore per chip (v7x); False otherwise."""
    try:
        kind = jax.devices()[0].device_kind.lower()
    except Exception:
        return False
    return "v7" in kind


def linear_bias(x2d, w, b, *, tm=512, tn=512, out_dtype=jnp.bfloat16):
    """out = x2d @ w + b as a blocked, double-buffered Pallas matmul.

    x2d: (M, K) activations in their native dtype (fp32 or bf16).
    w:   (K, N) weight, ALREADY in the desired MXU dtype (bf16) - cast once at
         model load, never per call.
    b:   (N,) bias (any float dtype; used in fp32).
    """
    M, K = x2d.shape
    K2, N = w.shape
    assert K == K2 and b.shape == (N,)

    # 128-aligned tiles where the dims allow (v5e: unmasked vst, full MXU
    # passes). K is untiled: for PaliGemma hidden sizes (<= a few thousand)
    # the (tm, K) + (K, tn) blocks fit VMEM on all generations.
    tm = _pick_tile(M, tm, 128 if M % 128 == 0 else 8)
    tn = _pick_tile(N, tn, 128)
    grid = (M // tm, N // tn)

    b2 = b.reshape(1, N).astype(jnp.float32)

    # VMEM limit from the actual double-buffered block footprint (+50% and
    # 1 MiB headroom), capped under v7x's 64 MiB physical VMEM.
    x_blk = tm * K * x2d.dtype.itemsize
    w_blk = K * tn * w.dtype.itemsize
    b_blk = max(tn, 128) * 4
    o_blk = tm * tn * jnp.dtype(out_dtype).itemsize
    vmem_bytes = 2 * (x_blk + w_blk + b_blk + o_blk)
    vmem_bytes = vmem_bytes + vmem_bytes // 2 + (1 << 20)
    vmem_bytes = int(max(min(vmem_bytes, 48 * 1024 * 1024), 4 * 1024 * 1024))

    def call(dim_semantics):
        return pl.pallas_call(
            _proj_kernel,
            out_shape=jax.ShapeDtypeStruct((M, N), out_dtype),
            grid_spec=pltpu.PrefetchScalarGridSpec(
                num_scalar_prefetch=0,
                grid=grid,
                in_specs=[
                    pl.BlockSpec((tm, K), lambda i, j: (i, 0)),
                    pl.BlockSpec((K, tn), lambda i, j: (0, j)),
                    pl.BlockSpec((1, tn), lambda i, j: (0, j)),
                ],
                out_specs=pl.BlockSpec((tm, tn), lambda i, j: (i, j)),
            ),
            compiler_params=pltpu.CompilerParams(
                dimension_semantics=dim_semantics,
                vmem_limit_bytes=vmem_bytes,
            ),
        )(x2d, w, b2)

    # On v7x, mark an even-count grid axis CORE_PARALLEL so both TensorCores
    # get half the grid; fall back to plain "parallel" if unsupported.
    par = getattr(pltpu, "PARALLEL", "parallel")
    core = getattr(pltpu, "CORE_PARALLEL", None)
    candidates = []
    if core is not None and _has_multiple_tensorcores():
        if grid[1] >= 2 and grid[1] % 2 == 0:
            candidates.append((par, core))
        elif grid[0] >= 2 and grid[0] % 2 == 0:
            candidates.append((core, par))
    candidates.append(("parallel", "parallel"))

    last_err = None
    for sem in candidates:
        try:
            return call(sem)
        except Exception as e:  # unsupported semantics on this chip/runtime
            last_err = e
    raise last_err


def multimodal_projector(image_embeds, w, b, **kw):
    """PaliGemmaMultiModalProjector.forward: (B, S, H_vis) -> (B, S, proj_dim)."""
    B, S, H = image_embeds.shape
    out2d = linear_bias(image_embeds.reshape(B * S, H), w, b, **kw)
    return out2d.reshape(B, S, w.shape[1])


# --------------------------------- Main ---------------------------------------

if __name__ == "__main__":
    key = jax.random.PRNGKey(0)

    def run_case(case_id, B, S, H_vis, proj_dim, tol=5e-2):
        k = jax.random.fold_in(key, case_id)
        kx, kw, kb = jax.random.split(k, 3)
        image_embeds = jax.random.normal(kx, (B, S, H_vis), jnp.float32)
        # nn.Linear stores weight as (out, in); keep it pre-transposed as
        # (in, out) so the kernel computes x @ W directly.
        w_f32 = 0.02 * jax.random.normal(kw, (H_vis, proj_dim), jnp.float32)
        b = 0.02 * jax.random.normal(kb, (proj_dim,), jnp.float32)
        # Weight is cast to bf16 ONCE ("at model load"); the per-call wrapper
        # never re-casts it.  bf16 compute / bf16 output is a documented,
        # explicit inference-precision choice.
        w_bf16 = w_f32.astype(jnp.bfloat16)

        out = multimodal_projector(image_embeds, w_bf16, b)
        out = jax.block_until_ready(out)

        assert out.shape == (B, S, proj_dim), out.shape
        out_f32 = out.astype(jnp.float32)
        assert bool(jnp.all(jnp.isfinite(out_f32)))

        ref = jnp.einsum("bsh,hp->bsp", image_embeds, w_f32) + b
        max_err = float(jnp.max(jnp.abs(out_f32 - ref)))
        # bf16 operands / bf16 output with fp32 accumulation.
        assert max_err < tol, max_err
        return out

    # Small demo shape consistent with the module (B, num_image_tokens, H_vis).
    # N=64 < 128 -> full-dim block with masked stores; correct, not a real
    # PaliGemma shape.
    run_case(0, B=2, S=16, H_vis=32, proj_dim=64)
    # SigLIP-So400m / PaliGemma-like shape (M=512, K=1152, N=2048):
    # grid = (1, 4), weight streamed from HBM exactly once.
    run_case(1, B=2, S=256, H_vis=1152, proj_dim=2048)

    print("KERNEL_OK")
</pallas_src>

<mosaic_0001>
module attributes {stable_mosaic.version = 11 : i64} {
  func.func @_proj_kernel(%arg0: i32, %arg1: i32, %arg2: memref<32x32xf32, #tpu.memory_space<vmem>>, %arg3: memref<32x64xbf16, #tpu.memory_space<vmem>>, %arg4: memref<1x64xf32, #tpu.memory_space<vmem>>, %arg5: memref<32x64xbf16, #tpu.memory_space<vmem>>) attributes {dimension_semantics = [#tpu.dimension_semantics<parallel>, #tpu.dimension_semantics<parallel>], iteration_bounds = array<i64: 1, 1>, scalar_prefetch = 0 : i64, scratch_operands = 0 : i64, tpu.core_type = #tpu.core_type<tc>, window_params = [{transform_indices = @transform_0, window_bounds = array<i64: 32, 32>}, {transform_indices = @transform_1, window_bounds = array<i64: 32, 64>}, {transform_indices = @transform_2, window_bounds = array<i64: 1, 64>}, {transform_indices = @transform_3, window_bounds = array<i64: 32, 64>}]} {
    %c0 = arith.constant 0 : index
    %c0_0 = arith.constant 0 : index
    %0 = vector.load %arg2[%c0, %c0_0] : memref<32x32xf32, #tpu.memory_space<vmem>>, vector<32x32xf32>
    %1 = arith.truncf %0 : vector<32x32xf32> to vector<32x32xbf16>
    %c0_1 = arith.constant 0 : index
    %c0_2 = arith.constant 0 : index
    %2 = vector.load %arg3[%c0_1, %c0_2] : memref<32x64xbf16, #tpu.memory_space<vmem>>, vector<32x64xbf16>
    %cst = arith.constant dense<0.000000e+00> : vector<32x64xf32>
    %3 = tpu.matmul %1, %2, %cst {dimension_numbers = #tpu.dot_dimension_numbers<[1], [0], [0], [1], [0, 0, 1, 1], [], []>} : vector<32x32xbf16>, vector<32x64xbf16>, vector<32x64xf32> -> vector<32x64xf32>
    %c0_3 = arith.constant 0 : index
    %c0_4 = arith.constant 0 : index
    %4 = vector.load %arg4[%c0_3, %c0_4] : memref<1x64xf32, #tpu.memory_space<vmem>>, vector<1x64xf32>
    %5 = vector.broadcast %4 : vector<1x64xf32> to vector<32x64xf32>
    %6 = arith.addf %3, %5 : vector<32x64xf32>
    %7 = arith.truncf %6 : vector<32x64xf32> to vector<32x64xbf16>
    %c0_5 = arith.constant 0 : index
    %c0_6 = arith.constant 0 : index
    %8 = vector.load %arg5[%c0_5, %c0_6] : memref<32x64xbf16, #tpu.memory_space<vmem>>, vector<32x64xbf16>
    tpu.vector_store %arg5[%c0_5, %c0_6], %7 {strides = array<i32>} : memref<32x64xbf16, #tpu.memory_space<vmem>>, vector<32x64xbf16>,
    return
  }
  func.func @transform_0(%arg0: i32, %arg1: i32) -> (i32, i32) {
    %c0_i32 = arith.constant 0 : i32
    %c0_i32_0 = arith.constant 0 : i32
    return %arg0, %c0_i32 : i32, i32
  }
  func.func @transform_1(%arg0: i32, %arg1: i32) -> (i32, i32) {
    %c0_i32 = arith.constant 0 : i32
    %c0_i32_0 = arith.constant 0 : i32
    return %c0_i32, %arg1 : i32, i32
  }
  func.func @transform_2(%arg0: i32, %arg1: i32) -> (i32, i32) {
    %c0_i32 = arith.constant 0 : i32
    %c0_i32_0 = arith.constant 0 : i32
    return %c0_i32, %arg1 : i32, i32
  }
  func.func @transform_3(%arg0: i32, %arg1: i32) -> (i32, i32) {
    %c0_i32 = arith.constant 0 : i32
    return %arg0, %arg1 : i32, i32
  }
}

</mosaic_0001>

<llo_original>
// kernel: tpu_custom_call.1
$region0: #{tpu_custom_call.1}
  #allocation0 [shape = 'u32[]', space=smem, size = 0x4, offset = 0x4, fixed_abs, tag = 'smem constant byte address 0x4 - core index']
  #allocation1 [shape = 'u32[144,128]{1,0:T(1,128)}', space=vmem, size = 0x12000, scoped, tag = 'internal scratch']
  %s0 = inlined_call_operand.hbm [shape: f32[32,32], index: 0, kind: input, shape index: {}]
  %s1 = inlined_call_operand.hbm [shape: bf16[32,64], index: 1, kind: input, shape index: {}]
  %s2 = inlined_call_operand.vmem [shape: f32[1,64], index: 2, kind: input, shape index: {}]
  %s3 = inlined_call_operand.hbm [shape: bf16[32,64], index: 3, kind: output, shape index: {}]
  %s4 = sld [smem:[#allocation0]]
  $region30: #{tpu_custom_call.1} parent=0
    _
  %s6 = ssub.s32 1, %s4
  %s7 = scalar_select 0, %s6, %s4
  $region1: #{tpu_custom_call.1} parent=0
    #allocation2 [shape = 'u8[16384]{0}', space=vmem, size = 0x4000, scoped, tag = 'input window, operand 0, single buffered']
    #allocation3 [shape = 's32[1]{0}', space=sflag, size = 0x4, scoped, tag = 'scoped memory for tpu_custom_call.1']
    #allocation4 [shape = 's32[1]{0}', space=sflag, size = 0x4, scoped, tag = 'scoped memory for tpu_custom_call.1']
    #allocation5 [shape = 'u8[8192]{0}', space=vmem, size = 0x2000, scoped, tag = 'input window, operand 1, single buffered']
    #allocation6 [shape = 's32[1]{0}', space=sflag, size = 0x4, scoped, tag = 'scoped memory for tpu_custom_call.1']
    #allocation7 [shape = 'u8[8192]{0}', space=vmem, size = 0x2000, scoped, tag = 'output window, operand 0, single buffered']
    %8 = vsyncpa [#allocation3], 0
    %9 = vsyncpa [#allocation6], 0
    %10 = vsyncpa [#allocation4], 0
    // Predicated region
    $region2: #{tpu_custom_call.1} parent=1 // pred_check
      _
    $region3: #{tpu_custom_call.1} parent=1 // pred_check_branch
      %12 = sbr.rel (0) target = $region5
    $region4: #{tpu_custom_call.1} parent=1 // pred_region
      %s14 = ssub.s32 512, 512
      %15 = vsyncadd [#allocation3], %s14
      %s16 = sshll.u32 [#allocation2], 4
      %s17 = int_to_ptr.vmem [resolvable:$true] %s16
      %22 = dma.hbm_to_vmem [thread:$0]  %s0, 512, %s17, [#allocation3], 128, 128, 8
    $region5: #{tpu_custom_call.1} parent=1 // pred_fallthru
      _
    // Predicated region
    $region6: #{tpu_custom_call.1} parent=1 // pred_check
      _
    $region7: #{tpu_custom_call.1} parent=1 // pred_check_branch
      %24 = sbr.rel (0) target = $region9
    $region8: #{tpu_custom_call.1} parent=1 // pred_region
      %s26 = ssub.s32 256, 256
      %27 = vsyncadd [#allocation6], %s26
      %s28 = sshll.u32 [#allocation5], 4
      %s29 = int_to_ptr.vmem [resolvable:$true] %s28
      %34 = dma.hbm_to_vmem [thread:$0]  %s1, 256, %s29, [#allocation6], 64, 64, 4
    $region9: #{tpu_custom_call.1} parent=1 // pred_fallthru
      _
    // Predicated region
    $region10: #{tpu_custom_call.1} parent=1 // pred_check
      _
    $region11: #{tpu_custom_call.1} parent=1 // pred_check_branch
      %36 = sbr.rel (0) target = $region13
    $region12: #{tpu_custom_call.1} parent=1 // pred_region
      _
    $region13: #{tpu_custom_call.1} parent=1 // pred_fallthru
      _
    // Predicated region
    $region14: #{tpu_custom_call.1} parent=1 // pred_check
      _
    $region15: #{tpu_custom_call.1} parent=1 // pred_check_branch
      %38 = sbr.rel (0) target = $region17
    $region16: #{tpu_custom_call.1} parent=1 // pred_region
      %39 = dma.done [#allocation3], 512
    $region17: #{tpu_custom_call.1} parent=1 // pred_fallthru
      _
    // Predicated region
    $region18: #{tpu_custom_call.1} parent=1 // pred_check
      _
    $region19: #{tpu_custom_call.1} parent=1 // pred_check_branch
      %41 = sbr.rel (0) target = $region21
    $region20: #{tpu_custom_call.1} parent=1 // pred_region
      %42 = dma.done [#allocation6], 256
    $region21: #{tpu_custom_call.1} parent=1 // pred_fallthru
      _
    %v44 = vld [vmem:[#allocation2] sm:$0xff]
    %v45 = vld [vmem:[#allocation2 + $0x8] sm:$0xff]
    %v46 = vld [vmem:[#allocation2 + $0x10] sm:$0xff]
    %v47 = vld [vmem:[#allocation2 + $0x18] sm:$0xff]
    %v48 = vpack.c.bf16 %v45, %v44
    %v49 = vpack.c.bf16 %v47, %v46
    %v50 = vld [vmem:[#allocation5] sm:$0xf]
    %v51 = vld [vmem:[#allocation5 + $0x4] sm:$0xf]
    %v52 = vld [vmem:[#allocation5 + $0x8] sm:$0xf]
    %v53 = vld [vmem:[#allocation5 + $0xc] sm:$0xf]
    %v54 = vld [vmem:[%s2] sm:$0x1]
    %v56 = vlaneseq
    %v57 = vshrl.u32 %v56, 7
    %v58 = vsub.s32 0, %v57
    %v59 = vrot.slane %v54, %v58
    %v65 = vunpack.c.l.b16 %v50
    %v66 = vunpack.c.l.b16 %v51
    %v67 = vunpack.c.l.b16 %v52
    %v68 = vunpack.c.l.b16 %v53
    %v69 = vpack.c.b16 %v66, %v65
    %v70 = vpack.c.b16 %v68, %v67
    %vm73 = vcmask 261120
    %v75 = vsel %vm73, %v48, 0
    %v78 = vsel %vm73, %v49, 0
    %80 = vmatprep.subr.bf16.mxu0 0
    %81 = vmatpush1.bf16.msra.mxu0 %v69
    %82 = vmatprep.subr.bf16.mxu0 0
    %83 = vmatpush1.bf16.msra.mxu0 %v70
    %84 = vmatprep.subr.bf16.mxu0 0
    %85 = vmatpush1.bf16.msra.mxu0 0
    %86 = vmatprep.subr.bf16.mxu0 0
    %87 = vmatpush1.bf16.msra.mxu0 0
    %88 = vmatprep.subr.bf16.mxu0 0
    %89 = vmatpush1.bf16.msra.mxu0 0
    %90 = vmatprep.subr.bf16.mxu0 0
    %91 = vmatpush1.bf16.msra.mxu0 0
    %92 = vmatprep.subr.bf16.mxu0 0
    %93 = vmatpush1.bf16.msra.mxu0 0
    %94 = vmatprep.subr.bf16.mxu0 0
    %95 = vmatpush1.bf16.msra.mxu0 0
    %96 = vmatprep.subr.bf16.mxu0 0
    %97 = vmatpush1.bf16.msra.mxu0 0
    %98 = vmatprep.subr.bf16.mxu0 0
    %99 = vmatpush1.bf16.msra.mxu0 0
    %100 = vmatprep.subr.bf16.mxu0 0
    %101 = vmatpush1.bf16.msra.mxu0 0
    %102 = vmatprep.subr.bf16.mxu0 0
    %103 = vmatpush1.bf16.msra.mxu0 0
    %104 = vmatprep.subr.bf16.mxu0 0
    %105 = vmatpush1.bf16.msra.mxu0 0
    %106 = vmatprep.subr.bf16.mxu0 0
    %107 = vmatpush1.bf16.msra.mxu0 0
    %108 = vmatprep.subr.bf16.mxu0 0
    %109 = vmatpush1.bf16.msra.mxu0 0
    %110 = vmatprep.subr.bf16.mxu0 0
    %111 = vmatpush1.bf16.msra.mxu0 0
    %112 = vmatprep.mubr.bf16.mxu0 0
    %113 = vmatmul.mubr.bf16.gmra.mrb[0].mxu0 %v75
    %v114 = vpop.f32.mrb[0].mxu0
    %v115 = vadd.f32 %v59, %v114
    %v116 = vpop.f32.mrb[0].mxu0
    %v117 = vpop.f32.mrb[0].mxu0
    %v118 = vadd.f32 %v59, %v117
    %v119 = vpop.f32.mrb[0].mxu0
    %120 = vmatprep.mubr.bf16.mxu0 0
    %121 = vmatmul.mubr.bf16.gmra.mrb[0].mxu0 %v78
    %v122 = vpop.f32.mrb[0].mxu0
    %v123 = vadd.f32 %v59, %v122
    %v124 = vpop.f32.mrb[0].mxu0
    %v125 = vpop.f32.mrb[0].mxu0
    %v126 = vadd.f32 %v59, %v125
    %v127 = vpop.f32.mrb[0].mxu0
    %128 = vdwg.mxu0
    %v129 = vpack.c.bf16 %v118, %v115
    %v130 = vpack.c.bf16 %v126, %v123
    %v133 = vunpack.c.l.b16 %v129
    %v134 = vunpack.c.h.b16 %v129
    %v135 = vunpack.c.l.b16 %v130
    %v136 = vunpack.c.h.b16 %v130
    %v137 = vpack.c.b16 %v133, %v133
    %v138 = vpack.c.b16 %v134, %v134
    %v139 = vpack.c.b16 %v135, %v135
    %v140 = vpack.c.b16 %v136, %v136
    %vm145 = vcmask 519168
    %146 = vst.msk [vmem:[#allocation7] sm:$0xf] %vm145, %v137
    %147 = vst.msk [vmem:[#allocation7 + $0x4] sm:$0xf] %vm145, %v138
    %148 = vst.msk [vmem:[#allocation7 + $0x8] sm:$0xf] %vm145, %v139
    %149 = vst.msk [vmem:[#allocation7 + $0xc] sm:$0xf] %vm145, %v140
    // Predicated region
    $region22: #{tpu_custom_call.1} parent=1 // pred_check
      _
    $region23: #{tpu_custom_call.1} parent=1 // pred_check_branch
      %151 = sbr.rel (0) target = $region25
    $region24: #{tpu_custom_call.1} parent=1 // pred_region
      %s153 = ssub.s32 256, 256
      %154 = vsyncadd [#allocation4], %s153
      %s155 = sshll.u32 [#allocation7], 4
      %s156 = int_to_ptr.vmem [resolvable:$true] %s155
      %161 = dma.vmem_to_hbm [thread:$0]  %s156, 256, %s3, [#allocation4], 64, 64, 4
    $region25: #{tpu_custom_call.1} parent=1 // pred_fallthru
      _
    // Predicated region
    $region26: #{tpu_custom_call.1} parent=1 // pred_check
      _
    $region27: #{tpu_custom_call.1} parent=1 // pred_check_branch
      %163 = sbr.rel (0) target = $region29
    $region28: #{tpu_custom_call.1} parent=1 // pred_region
      %164 = dma.done [#allocation4], 256
    $region29: #{tpu_custom_call.1} parent=1 // pred_fallthru
      _
    %165 = vsyncpa [#allocation3], 1
    %166 = vsyncpa [#allocation6], 1
    %167 = vsyncpa [#allocation4], 1

</llo_original>
